<compile_context>
chip_gen: v5e
topology: v5e:2x2
jax: 0.10.0
libtpu: 0.0.40
codegen_flags: <defaults>
</compile_context>

<pallas_src>
import functools

import jax
import jax.numpy as jnp
from jax.experimental import pallas as pl
from jax.experimental.pallas import tpu as pltpu


def _embedder_kernel(x_ref, xrep_ref, cf_ref, sf_ref, out_ref, *, D, DF):
    """Transposed-layout body.

    x_ref:    (D,      T)  raw inputs (rows = input dims, lanes = points)
    xrep_ref: (D*F,    T)  row d*F+f == x[d, :]
    cf_ref:   (D*F,    1)  tile(cos_freq, D) as a column
    sf_ref:   (D*F,    1)  tile(sin_freq, D) as a column
    out_ref:  (D+2DF,  T)
    """
    # Pass-through of the raw inputs (rows 0..D-1).
    out_ref[0:D, :] = x_ref[...]

    xr = xrep_ref[...]                                   # (DF, T)
    # One cos and one sin over the full D*F-wide slab; lane-broadcast of the
    # (DF, 1) frequency columns is a cheap VPU multiply.
    out_ref[D:D + DF, :] = jnp.cos(xr * cf_ref[...])     # rows D .. D+DF-1
    out_ref[D + DF:, :] = jnp.sin(xr * sf_ref[...])      # rows D+DF .. end


def learnable_embedder(inputs, cos_freq, sin_freq, *, tile_n=16384):
    """JAX wrapper around the Pallas kernel.

    inputs:   (N, D) float32
    cos_freq: (F,)   float32   (learnable parameter)
    sin_freq: (F,)   float32   (learnable parameter)
    returns:  (N, D + 2*D*F) float32, column order identical to the PyTorch module.
    """
    N, D = inputs.shape
    F = cos_freq.shape[0]
    DF = D * F
    out_dim = D + 2 * DF

    # --- lane-dense (transposed) presentation: N on the lane axis ------------
    x_t = inputs.T                                  # (D, N)
    x_rep = jnp.repeat(x_t, F, axis=0)              # (D*F, N); row d*F+f = x[:, d]
    cf_col = jnp.tile(cos_freq, D).reshape(DF, 1)   # (D*F, 1); row d*F+f = cos_freq[f]
    sf_col = jnp.tile(sin_freq, D).reshape(DF, 1)

    # Lane-axis tile: must be a multiple of 128 or equal the full extent.
    if N <= tile_n:
        tile = N                                    # full-extent block (any N ok)
    else:
        tile = tile_n                               # multiple of 128; last tile may be ragged
    grid = (pl.cdiv(N, tile),)

    kernel = functools.partial(_embedder_kernel, D=D, DF=DF)

    out_t = pl.pallas_call(
        kernel,
        out_shape=jax.ShapeDtypeStruct((out_dim, N), inputs.dtype),
        grid=grid,
        in_specs=[
            pl.BlockSpec((D, tile), lambda i: (0, i)),
            pl.BlockSpec((DF, tile), lambda i: (0, i)),
            pl.BlockSpec((DF, 1), lambda i: (0, 0)),
            pl.BlockSpec((DF, 1), lambda i: (0, 0)),
        ],
        out_specs=pl.BlockSpec((out_dim, tile), lambda i: (0, i)),
        compiler_params=pltpu.CompilerParams(
            dimension_semantics=("parallel",)),
    )(x_t, x_rep, cf_col, sf_col)

    # Transpose back to the module's (N, out_dim) layout.
    # TODO(synk): downstream consumers could keep the (out_dim, N) layout and skip this.
    return out_t.T


def _reference(inputs, cos_freq, sin_freq):
    N = inputs.shape[0]
    cos_ref = jnp.cos(inputs[..., None] * cos_freq).reshape(N, -1)
    sin_ref = jnp.sin(inputs[..., None] * sin_freq).reshape(N, -1)
    return jnp.concatenate((inputs, cos_ref, sin_ref), axis=-1)


if __name__ == "__main__":
    # Module hyper-params (matching __init__ with log_sampling=True).
    input_dims = 3
    num_freqs = 4
    max_freq_log2 = 3.0

    # Parameters: 2.0 ** linspace(0, max_freq_log2, num_freqs) -> [1, 2, 4, 8]
    cos_freq = 2.0 ** jnp.linspace(0.0, max_freq_log2, num_freqs, dtype=jnp.float32)
    sin_freq = 2.0 ** jnp.linspace(0.0, max_freq_log2, num_freqs, dtype=jnp.float32)

    key = jax.random.PRNGKey(0)

    # Small single-block case.
    N = 8
    inputs = jax.random.normal(key, (N, input_dims), dtype=jnp.float32)
    out = jax.block_until_ready(learnable_embedder(inputs, cos_freq, sin_freq))
    expected_out_dim = 2 * num_freqs * input_dims + input_dims
    assert out.shape == (N, expected_out_dim), out.shape
    ref = _reference(inputs, cos_freq, sin_freq)
    assert jnp.allclose(out, ref, atol=1e-5, rtol=1e-5), "mismatch vs reference (N=8)"

    # Tiled + ragged-last-tile case (exercises grid pipelining path).
    N2 = 300
    inputs2 = jax.random.normal(jax.random.PRNGKey(1), (N2, input_dims), dtype=jnp.float32)
    out2 = jax.block_until_ready(
        learnable_embedder(inputs2, cos_freq, sin_freq, tile_n=128))
    ref2 = _reference(inputs2, cos_freq, sin_freq)
    assert out2.shape == (N2, expected_out_dim), out2.shape
    assert jnp.allclose(out2, ref2, atol=1e-5, rtol=1e-5), "mismatch vs reference (N=300, tiled)"

    print("KERNEL_OK")
</pallas_src>

<mosaic_0001>
module attributes {stable_mosaic.version = 11 : i64} {
  func.func @_embedder_kernel(%arg0: i32, %arg1: memref<3x8xf32, #tpu.memory_space<vmem>>, %arg2: memref<12x8xf32, #tpu.memory_space<vmem>>, %arg3: memref<12x1xf32, #tpu.memory_space<vmem>>, %arg4: memref<12x1xf32, #tpu.memory_space<vmem>>, %arg5: memref<27x8xf32, #tpu.memory_space<vmem>>) attributes {dimension_semantics = [#tpu.dimension_semantics<parallel>], iteration_bounds = array<i64: 1>, scalar_prefetch = 0 : i64, scratch_operands = 0 : i64, tpu.core_type = #tpu.core_type<tc>, window_params = [{transform_indices = @transform_0, window_bounds = array<i64: 3, 8>}, {transform_indices = @transform_1, window_bounds = array<i64: 12, 8>}, {pipeline_mode = #tpu.pipeline_mode<synchronous>, transform_indices = @transform_2, window_bounds = array<i64: 12, 1>}, {pipeline_mode = #tpu.pipeline_mode<synchronous>, transform_indices = @transform_3, window_bounds = array<i64: 12, 1>}, {transform_indices = @transform_4, window_bounds = array<i64: 27, 8>}]} {
    %c0 = arith.constant 0 : index
    %c0_0 = arith.constant 0 : index
    %0 = vector.load %arg1[%c0, %c0_0] : memref<3x8xf32, #tpu.memory_space<vmem>>, vector<3x8xf32>
    %c0_1 = arith.constant 0 : index
    %c0_2 = arith.constant 0 : index
    %1 = vector.load %arg5[%c0_1, %c0_2] : memref<27x8xf32, #tpu.memory_space<vmem>>, vector<3x8xf32>
    tpu.vector_store %arg5[%c0_1, %c0_2], %0 {strides = array<i32>} : memref<27x8xf32, #tpu.memory_space<vmem>>, vector<3x8xf32>,
    %c0_3 = arith.constant 0 : index
    %c0_4 = arith.constant 0 : index
    %2 = vector.load %arg2[%c0_3, %c0_4] : memref<12x8xf32, #tpu.memory_space<vmem>>, vector<12x8xf32>
    %c0_5 = arith.constant 0 : index
    %c0_6 = arith.constant 0 : index
    %3 = vector.load %arg3[%c0_5, %c0_6] : memref<12x1xf32, #tpu.memory_space<vmem>>, vector<12x1xf32>
    %4 = vector.broadcast %3 : vector<12x1xf32> to vector<12x8xf32>
    %5 = arith.mulf %2, %4 : vector<12x8xf32>
    %6 = math.cos %5 : vector<12x8xf32>
    %c3 = arith.constant 3 : index
    %c0_7 = arith.constant 0 : index
    %7 = vector.load %arg5[%c3, %c0_7] : memref<27x8xf32, #tpu.memory_space<vmem>>, vector<12x8xf32>
    tpu.vector_store %arg5[%c3, %c0_7], %6 {strides = array<i32>} : memref<27x8xf32, #tpu.memory_space<vmem>>, vector<12x8xf32>,
    %c0_8 = arith.constant 0 : index
    %c0_9 = arith.constant 0 : index
    %8 = vector.load %arg4[%c0_8, %c0_9] : memref<12x1xf32, #tpu.memory_space<vmem>>, vector<12x1xf32>
    %9 = vector.broadcast %8 : vector<12x1xf32> to vector<12x8xf32>
    %10 = arith.mulf %2, %9 : vector<12x8xf32>
    %11 = math.sin %10 : vector<12x8xf32>
    %c15 = arith.constant 15 : index
    %c0_10 = arith.constant 0 : index
    %12 = vector.load %arg5[%c15, %c0_10] : memref<27x8xf32, #tpu.memory_space<vmem>>, vector<12x8xf32>
    tpu.vector_store %arg5[%c15, %c0_10], %11 {strides = array<i32>} : memref<27x8xf32, #tpu.memory_space<vmem>>, vector<12x8xf32>,
    return
  }
  func.func @transform_0(%arg0: i32) -> (i32, i32) {
    %c0_i32 = arith.constant 0 : i32
    %c0_i32_0 = arith.constant 0 : i32
    return %c0_i32, %arg0 : i32, i32
  }
  func.func @transform_1(%arg0: i32) -> (i32, i32) {
    %c0_i32 = arith.constant 0 : i32
    %c0_i32_0 = arith.constant 0 : i32
    return %c0_i32, %arg0 : i32, i32
  }
  func.func @transform_2(%arg0: i32) -> (i32, i32) {
    %c0_i32 = arith.constant 0 : i32
    %c0_i32_0 = arith.constant 0 : i32
    %c0_i32_1 = arith.constant 0 : i32
    return %c0_i32, %c0_i32_0 : i32, i32
  }
  func.func @transform_3(%arg0: i32) -> (i32, i32) {
    %c0_i32 = arith.constant 0 : i32
    %c0_i32_0 = arith.constant 0 : i32
    %c0_i32_1 = arith.constant 0 : i32
    return %c0_i32, %c0_i32_0 : i32, i32
  }
  func.func @transform_4(%arg0: i32) -> (i32, i32) {
    %c0_i32 = arith.constant 0 : i32
    %c0_i32_0 = arith.constant 0 : i32
    return %c0_i32, %arg0 : i32, i32
  }
}

</mosaic_0001>

<llo_original>
// kernel: tpu_custom_call.1
$region0: #{tpu_custom_call.1}
  #allocation0 [shape = 'u32[]', space=smem, size = 0x4, offset = 0x4, fixed_abs, tag = 'smem constant byte address 0x4 - core index']
  #allocation1 [shape = 'u32[72,128]{1,0:T(1,128)}', space=vmem, size = 0x9000, scoped, tag = 'internal scratch']
  %s0 = inlined_call_operand.vmem [shape: f32[3,8], index: 0, kind: input, shape index: {}]
  %s1 = inlined_call_operand.vmem [shape: f32[12,8], index: 1, kind: input, shape index: {}]
  %s2 = inlined_call_operand.vmem [shape: f32[12,1], index: 2, kind: input, shape index: {}]
  %s3 = inlined_call_operand.vmem [shape: f32[12,1], index: 3, kind: input, shape index: {}]
  %s4 = inlined_call_operand.vmem [shape: f32[27,8], index: 4, kind: output, shape index: {}]
  %s5 = sld [smem:[#allocation0]]
  $region26: #{tpu_custom_call.1} parent=0
    _
  %s7 = ssub.s32 1, %s5
  %s8 = scalar_select 0, %s7, %s5
  // Predicated region
  $region2: #{tpu_custom_call.1} parent=0 // pred_check
    _
  $region3: #{tpu_custom_call.1} parent=0 // pred_check_branch
    %10 = sbr.rel (0) target = $region5
  $region4: #{tpu_custom_call.1} parent=0 // pred_region
    _
  $region5: #{tpu_custom_call.1} parent=0 // pred_fallthru
    _
  // Predicated region
  $region6: #{tpu_custom_call.1} parent=0 // pred_check
    _
  $region7: #{tpu_custom_call.1} parent=0 // pred_check_branch
    %12 = sbr.rel (0) target = $region9
  $region8: #{tpu_custom_call.1} parent=0 // pred_region
    _
  $region9: #{tpu_custom_call.1} parent=0 // pred_fallthru
    _
  // Predicated region
  $region10: #{tpu_custom_call.1} parent=0 // pred_check
    _
  $region11: #{tpu_custom_call.1} parent=0 // pred_check_branch
    %14 = sbr.rel (0) target = $region13
  $region12: #{tpu_custom_call.1} parent=0 // pred_region
    _
  $region13: #{tpu_custom_call.1} parent=0 // pred_fallthru
    _
  // Predicated region
  $region14: #{tpu_custom_call.1} parent=0 // pred_check
    _
  $region15: #{tpu_custom_call.1} parent=0 // pred_check_branch
    %16 = sbr.rel (0) target = $region17
  $region16: #{tpu_custom_call.1} parent=0 // pred_region
    _
  $region17: #{tpu_custom_call.1} parent=0 // pred_fallthru
    _
  %v17 = vld [vmem:[%s0] sm:$0x7]
  %vm18 = vcmask 59392
  %19 = vst.msk [vmem:[%s4] sm:$0x7] %vm18, %v17
  %v20 = vld [vmem:[%s1] sm:$0xff]
  %v21 = vld [vmem:[%s1 + $0x8] sm:$0xf]
  %v22 = vld [vmem:[%s2] sm:$0xff]
  %v23 = vld [vmem:[%s2 + $0x8] sm:$0xf]
  %25 = vset.pattern.permute.xlu0 0
  %26 = vperm.xlu0 %25, %v22
  %v27 = vpop.permute.xlu0 %26
  %30 = vset.pattern.permute.xlu0 0
  %31 = vperm.xlu0 %30, %v23
  %v32 = vpop.permute.xlu0 %31
  %v34 = vmul.f32 %v20, %v27
  %v35 = vmul.f32 %v21, %v32
  %v36 = vand.u32 2147483647, %v34
  %vm37 = vcmp.le.f32.partialorder %v36, 0.7853982
  %vm38 = vcmp.lt.s32.totalorder %v34, 0
  %v39 = vand.u32 %v34, 2139095040
  %v40 = vshrl.u32 %v39, 23
  %v41 = vsub.s32 %v40, 127
  %v42 = vand.u32 2147483647, %v34
  %v43 = vand.u32 %v42, 8388607
  %v44 = vor.u32 %v43, 8388608
  %v45 = vsub.s32 0, %v44
  %v46 = vadd.s32 %v41, 1
  %vm47 = vcmp.gt.s32.totalorder %v46, 0
  %v48 = vsel %vm47, %v46, 0
  %v49 = vshrl.u32 %v48, 5
  %v50 = vand.u32 %v48, 31
  %v51 = vsub.s32 32, %v50
  %v52 = vshrl.u32 683565275, %v51
  %v53 = vshll.u32 683565275, %v50
  %v54 = vshrl.u32 2475754826, %v51
  %v55 = vor.u32 %v53, %v54
  %v56 = vshll.u32 2475754826, %v50
  %v57 = vshrl.u32 2131351028, %v51
  %v58 = vor.u32 %v56, %v57
  %v59 = vshll.u32 2131351028, %v50
  %v60 = vshrl.u32 2102212464, %v51
  %v61 = vor.u32 %v59, %v60
  %v62 = vshll.u32 2102212464, %v50
  %v63 = vshrl.u32 920167782, %v51
  %v64 = vor.u32 %v62, %v63
  %v65 = vshll.u32 920167782, %v50
  %v66 = vshrl.u32 1326507024, %v51
  %v67 = vor.u32 %v65, %v66
  %vm68 = vcmp.lt.s32.totalorder %v49, 1
  %vm69 = vcmp.lt.s32.totalorder %v49, 2
  %vm70 = vcmp.lt.s32.totalorder %v49, 3
  %vm71 = vcmp.lt.s32.totalorder %v49, 4
  %v72 = vsel %vm68, %v52, %v55
  %v73 = vsel %vm71, %v61, 2102212464
  %v74 = vsel %vm70, %v58, %v73
  %v75 = vsel %vm69, %v72, %v74
  %v76 = vsel %vm68, %v55, %v58
  %v77 = vsel %vm71, %v64, 920167782
  %v78 = vsel %vm70, %v61, %v77
  %v79 = vsel %vm69, %v76, %v78
  %v80 = vsel %vm68, %v58, %v61
  %v81 = vsel %vm71, %v67, 1326507024
  %v82 = vsel %vm70, %v64, %v81
  %v83 = vsel %vm69, %v80, %v82
  %v84 = vshll.u32 %v44, 8
  %v85 = vand.u32 %v84, 65535
  %v86 = vshrl.u32 %v84, 16
  %v87 = vand.u32 %v83, 65535
  %v88 = vshrl.u32 %v83, 16
  %v89 = vmul.u32 %v85, %v87
  %v90 = vmul.u32 %v85, %v88
  %v91 = vmul.u32 %v86, %v87
  %v92 = vmul.u32 %v86, %v88
  %v93 = vshll.u32 %v90, 16
  %v94 = vshrl.u32 %v90, 16
  %v95 = vshll.u32 %v91, 16
  %v96 = vshrl.u32 %v91, 16
  %vm97 = vc.u32 %v89, %v93
  %v98 = vsel %vm97, 1, 0
  %v99 = vadd.s32 %v89, %v93
  %v100 = vadd.s32 %v92, %v98
  %vm101 = vc.u32 %v99, %v95
  %v102 = vsel %vm101, 1, 0
  %v103 = vadd.s32 %v99, %v95
  %v104 = vadd.s32 %v100, %v102
  %v105 = vadd.s32 %v104, %v94
  %v106 = vadd.s32 %v105, %v96
  %v107 = vand.u32 %v84, 65535
  %v108 = vshrl.u32 %v84, 16
  %v109 = vand.u32 %v79, 65535
  %v110 = vshrl.u32 %v79, 16
  %v111 = vmul.u32 %v107, %v109
  %v112 = vmul.u32 %v107, %v110
  %v113 = vmul.u32 %v108, %v109
  %v114 = vmul.u32 %v108, %v110
  %v115 = vshll.u32 %v112, 16
  %v116 = vshrl.u32 %v112, 16
  %v117 = vshll.u32 %v113, 16
  %v118 = vshrl.u32 %v113, 16
  %vm119 = vc.u32 %v111, %v115
  %v120 = vsel %vm119, 1, 0
  %v121 = vadd.s32 %v111, %v115
  %v122 = vadd.s32 %v114, %v120
  %vm123 = vc.u32 %v121, %v117
  %v124 = vsel %vm123, 1, 0
  %v125 = vadd.s32 %v121, %v117
  %v126 = vadd.s32 %v122, %v124
  %v127 = vadd.s32 %v126, %v116
  %v128 = vadd.s32 %v127, %v118
  %v129 = vmul.u32 %v84, %v75
  %v130 = vadd.s32 %v106, %v125
  %vm131 = vc.u32 %v106, %v125
  %v132 = vadd.s32 %v128, 1
  %v133 = vsel %vm131, %v132, %v128
  %v134 = vadd.s32 %v129, %v133
  %v135 = vadd.s32 %v134, 536870912
  %v136 = vshrl.u32 %v135, 30
  %v137 = vshll.u32 %v136, 30
  %v138 = vsub.s32 %v134, %v137
  %vm139 = vcmp.lt.s32.totalorder %v138, 0
  %v140 = vsub.s32 0, %v138
  %v141 = vsel %vm139, %v140, %v138
  %v142 = vclz %v141
  %v143 = vsub.s32 %v142, 2
  %vm144 = vcmp.gt.s32.totalorder 0, %v143
  %v145 = vsel %vm144, 0, %v143
  %v146 = vsub.s32 32, %v145
  %v147 = vshll.u32 %v138, %v145
  %v148 = vshrl.u32 %v130, %v146
  %v149 = vor.u32 %v147, %v148
  %v150 = vsub.s32 4294967266, %v145
  %v151 = vadd.s32 %v150, 127
  %v152 = vshll.u32 %v151, 23
  %v153 = vor.u32 4788187, %v152
  %v154 = vand.u32 2147483647, %v153
  %v156 = vcvt.s32.f32 %v149
  %v157 = vmul.f32 %v156, %v154
  %v158 = vxor.u32 %v157, 2147483648
  %v159 = vsel %vm38, %v158, %v157
  %v160 = vsub.s32 4, %v136
  %v161 = vsel %vm38, %v160, %v136
  %v162 = vsel %vm37, %v34, %v159
  %v163 = vsel %vm37, 0, %v161
  %v164 = vmul.f32 %v162, %v162
  %v165 = vmul.f32 %v164, -0.001358992
  %v166 = vadd.f32 %v165, 0.041655596
  %v167 = vmul.f32 %v164, %v166
  %v168 = vadd.f32 %v167, -0.4999988
  %v169 = vmul.f32 %v164, %v168
  %v170 = vadd.f32 1.0, %v169
  %v171 = vmul.f32 %v162, %v162
  %v172 = vmul.f32 %v171, -0.00019511016
  %v173 = vadd.f32 %v172, 0.008332121
  %v174 = vmul.f32 %v171, %v173
  %v175 = vadd.f32 %v174, -0.16666654
  %v176 = vmul.f32 %v171, %v175
  %v177 = vadd.f32 %v176, 1.0
  %v178 = vmul.f32 %v177, %v162
  %vm179 = vweird.f32 %v34
  %v180 = vand.u32 %v163, 3
  %vm181 = vcmp.lt.s32.totalorder %v180, 2
  %vm182 = vcmp.eq.s32.totalorder %v180, 0
  %v183 = vxor.u32 %v178, 2147483648
  %v184 = vsel %vm182, %v170, %v183
  %vm185 = vcmp.eq.s32.totalorder %v180, 2
  %v186 = vxor.u32 %v170, 2147483648
  %v187 = vsel %vm185, %v186, %v178
  %v188 = vsel %vm181, %v184, %v187
  %v189 = vsel %vm179, nan, %v188
  %v190 = vand.u32 2147483647, %v35
  %vm191 = vcmp.le.f32.partialorder %v190, 0.7853982
  %vm192 = vcmp.lt.s32.totalorder %v35, 0
  %v193 = vand.u32 %v35, 2139095040
  %v194 = vshrl.u32 %v193, 23
  %v195 = vsub.s32 %v194, 127
  %v196 = vand.u32 2147483647, %v35
  %v197 = vand.u32 %v196, 8388607
  %v198 = vor.u32 %v197, 8388608
  %v199 = vsub.s32 0, %v198
  %v200 = vadd.s32 %v195, 1
  %vm201 = vcmp.gt.s32.totalorder %v200, 0
  %v202 = vsel %vm201, %v200, 0
  %v203 = vshrl.u32 %v202, 5
  %v204 = vand.u32 %v202, 31
  %v205 = vsub.s32 32, %v204
  %v206 = vshrl.u32 683565275, %v205
  %v207 = vshll.u32 683565275, %v204
  %v208 = vshrl.u32 2475754826, %v205
  %v209 = vor.u32 %v207, %v208
  %v210 = vshll.u32 2475754826, %v204
  %v211 = vshrl.u32 2131351028, %v205
  %v212 = vor.u32 %v210, %v211
  %v213 = vshll.u32 2131351028, %v204
  %v214 = vshrl.u32 2102212464, %v205
  %v215 = vor.u32 %v213, %v214
  %v216 = vshll.u32 2102212464, %v204
  %v217 = vshrl.u32 920167782, %v205
  %v218 = vor.u32 %v216, %v217
  %v219 = vshll.u32 920167782, %v204
  %v220 = vshrl.u32 1326507024, %v205
  %v221 = vor.u32 %v219, %v220
  %vm222 = vcmp.lt.s32.totalorder %v203, 1
  %vm223 = vcmp.lt.s32.totalorder %v203, 2
  %vm224 = vcmp.lt.s32.totalorder %v203, 3
  %vm225 = vcmp.lt.s32.totalorder %v203, 4
  %v226 = vsel %vm222, %v206, %v209
  %v227 = vsel %vm225, %v215, 2102212464
  %v228 = vsel %vm224, %v212, %v227
  %v229 = vsel %vm223, %v226, %v228
  %v230 = vsel %vm222, %v209, %v212
  %v231 = vsel %vm225, %v218, 920167782
  %v232 = vsel %vm224, %v215, %v231
  %v233 = vsel %vm223, %v230, %v232
  %v234 = vsel %vm222, %v212, %v215
  %v235 = vsel %vm225, %v221, 1326507024
  %v236 = vsel %vm224, %v218, %v235
  %v237 = vsel %vm223, %v234, %v236
  %v238 = vshll.u32 %v198, 8
  %v239 = vand.u32 %v238, 65535
  %v240 = vshrl.u32 %v238, 16
  %v241 = vand.u32 %v237, 65535
  %v242 = vshrl.u32 %v237, 16
  %v243 = vmul.u32 %v239, %v241
  %v244 = vmul.u32 %v239, %v242
  %v245 = vmul.u32 %v240, %v241
  %v246 = vmul.u32 %v240, %v242
  %v247 = vshll.u32 %v244, 16
  %v248 = vshrl.u32 %v244, 16
  %v249 = vshll.u32 %v245, 16
  %v250 = vshrl.u32 %v245, 16
  %vm251 = vc.u32 %v243, %v247
  %v252 = vsel %vm251, 1, 0
  %v253 = vadd.s32 %v243, %v247
  %v254 = vadd.s32 %v246, %v252
  %vm255 = vc.u32 %v253, %v249
  %v256 = vsel %vm255, 1, 0
  %v257 = vadd.s32 %v253, %v249
  %v258 = vadd.s32 %v254, %v256
  %v259 = vadd.s32 %v258, %v248
  %v260 = vadd.s32 %v259, %v250
  %v261 = vand.u32 %v238, 65535
  %v262 = vshrl.u32 %v238, 16
  %v263 = vand.u32 %v233, 65535
  %v264 = vshrl.u32 %v233, 16
  %v265 = vmul.u32 %v261, %v263
  %v266 = vmul.u32 %v261, %v264
  %v267 = vmul.u32 %v262, %v263
  %v268 = vmul.u32 %v262, %v264
  %v269 = vshll.u32 %v266, 16
  %v270 = vshrl.u32 %v266, 16
  %v271 = vshll.u32 %v267, 16
  %v272 = vshrl.u32 %v267, 16
  %vm273 = vc.u32 %v265, %v269
  %v274 = vsel %vm273, 1, 0
  %v275 = vadd.s32 %v265, %v269
  %v276 = vadd.s32 %v268, %v274
  %vm277 = vc.u32 %v275, %v271
  %v278 = vsel %vm277, 1, 0
  %v279 = vadd.s32 %v275, %v271
  %v280 = vadd.s32 %v276, %v278
  %v281 = vadd.s32 %v280, %v270
  %v282 = vadd.s32 %v281, %v272
  %v283 = vmul.u32 %v238, %v229
  %v284 = vadd.s32 %v260, %v279
  %vm285 = vc.u32 %v260, %v279
  %v286 = vadd.s32 %v282, 1
  %v287 = vsel %vm285, %v286, %v282
  %v288 = vadd.s32 %v283, %v287
  %v289 = vadd.s32 %v288, 536870912
  %v290 = vshrl.u32 %v289, 30
  %v291 = vshll.u32 %v290, 30
  %v292 = vsub.s32 %v288, %v291
  %vm293 = vcmp.lt.s32.totalorder %v292, 0
  %v294 = vsub.s32 0, %v292
  %v295 = vsel %vm293, %v294, %v292
  %v296 = vclz %v295
  %v297 = vsub.s32 %v296, 2
  %vm298 = vcmp.gt.s32.totalorder 0, %v297
  %v299 = vsel %vm298, 0, %v297
  %v300 = vsub.s32 32, %v299
  %v301 = vshll.u32 %v292, %v299
  %v302 = vshrl.u32 %v284, %v300
  %v303 = vor.u32 %v301, %v302
  %v304 = vsub.s32 4294967266, %v299
  %v305 = vadd.s32 %v304, 127
  %v306 = vshll.u32 %v305, 23
  %v307 = vor.u32 4788187, %v306
  %v308 = vand.u32 2147483647, %v307
  %v310 = vcvt.s32.f32 %v303
  %v311 = vmul.f32 %v310, %v308
  %v312 = vxor.u32 %v311, 2147483648
  %v313 = vsel %vm192, %v312, %v311
  %v314 = vsub.s32 4, %v290
  %v315 = vsel %vm192, %v314, %v290
  %v316 = vsel %vm191, %v35, %v313
  %v317 = vsel %vm191, 0, %v315
  %v318 = vmul.f32 %v316, %v316
  %v319 = vmul.f32 %v318, -0.001358992
  %v320 = vadd.f32 %v319, 0.041655596
  %v321 = vmul.f32 %v318, %v320
  %v322 = vadd.f32 %v321, -0.4999988
  %v323 = vmul.f32 %v318, %v322
  %v324 = vadd.f32 1.0, %v323
  %v325 = vmul.f32 %v316, %v316
  %v326 = vmul.f32 %v325, -0.00019511016
  %v327 = vadd.f32 %v326, 0.008332121
  %v328 = vmul.f32 %v325, %v327
  %v329 = vadd.f32 %v328, -0.16666654
  %v330 = vmul.f32 %v325, %v329
  %v331 = vadd.f32 %v330, 1.0
  %v332 = vmul.f32 %v331, %v316
  %vm333 = vweird.f32 %v35
  %v334 = vand.u32 %v317, 3
  %vm335 = vcmp.lt.s32.totalorder %v334, 2
  %vm336 = vcmp.eq.s32.totalorder %v334, 0
  %v337 = vxor.u32 %v332, 2147483648
  %v338 = vsel %vm336, %v324, %v337
  %vm339 = vcmp.eq.s32.totalorder %v334, 2
  %v340 = vxor.u32 %v324, 2147483648
  %v341 = vsel %vm339, %v340, %v332
  %v342 = vsel %vm335, %v338, %v341
  %v343 = vsel %vm333, nan, %v342
  %vm344 = vcmask 64512
  %345 = vst.msk [vmem:[%s4 + $0x3] sm:$0xff] %vm344, %v189
  %vm346 = vcmask 60416
  %347 = vst.msk [vmem:[%s4 + $0xb] sm:$0xf] %vm346, %v343
  %v348 = vld [vmem:[%s3] sm:$0xff]
  %v349 = vld [vmem:[%s3 + $0x8] sm:$0xf]
  %351 = vset.pattern.permute.xlu0 0
  %352 = vperm.xlu0 %351, %v348
  %v353 = vpop.permute.xlu0 %352
  %356 = vset.pattern.permute.xlu0 0
  %357 = vperm.xlu0 %356, %v349
  %v358 = vpop.permute.xlu0 %357
  %v360 = vmul.f32 %v20, %v353
  %v361 = vmul.f32 %v21, %v358
  %v362 = vand.u32 2147483647, %v360
  %vm363 = vcmp.le.f32.partialorder %v362, 0.7853982
  %vm364 = vcmp.lt.s32.totalorder %v360, 0
  %v365 = vand.u32 %v360, 2139095040
  %v366 = vshrl.u32 %v365, 23
  %v367 = vsub.s32 %v366, 127
  %v368 = vand.u32 2147483647, %v360
  %v369 = vand.u32 %v368, 8388607
  %v370 = vor.u32 %v369, 8388608
  %v371 = vsub.s32 0, %v370
  %v372 = vadd.s32 %v367, 1
  %vm373 = vcmp.gt.s32.totalorder %v372, 0
  %v374 = vsel %vm373, %v372, 0
  %v375 = vshrl.u32 %v374, 5
  %v376 = vand.u32 %v374, 31
  %v377 = vsub.s32 32, %v376
  %v378 = vshrl.u32 683565275, %v377
  %v379 = vshll.u32 683565275, %v376
  %v380 = vshrl.u32 2475754826, %v377
  %v381 = vor.u32 %v379, %v380
  %v382 = vshll.u32 2475754826, %v376
  %v383 = vshrl.u32 2131351028, %v377
  %v384 = vor.u32 %v382, %v383
  %v385 = vshll.u32 2131351028, %v376
  %v386 = vshrl.u32 2102212464, %v377
  %v387 = vor.u32 %v385, %v386
  %v388 = vshll.u32 2102212464, %v376
  %v389 = vshrl.u32 920167782, %v377
  %v390 = vor.u32 %v388, %v389
  %v391 = vshll.u32 920167782, %v376
  %v392 = vshrl.u32 1326507024, %v377
  %v393 = vor.u32 %v391, %v392
  %vm394 = vcmp.lt.s32.totalorder %v375, 1
  %vm395 = vcmp.lt.s32.totalorder %v375, 2
  %vm396 = vcmp.lt.s32.totalorder %v375, 3
  %vm397 = vcmp.lt.s32.totalorder %v375, 4
  %v398 = vsel %vm394, %v378, %v381
  %v399 = vsel %vm397, %v387, 2102212464
  %v400 = vsel %vm396, %v384, %v399
  %v401 = vsel %vm395, %v398, %v400
  %v402 = vsel %vm394, %v381, %v384
  %v403 = vsel %vm397, %v390, 920167782
  %v404 = vsel %vm396, %v387, %v403
  %v405 = vsel %vm395, %v402, %v404
  %v406 = vsel %vm394, %v384, %v387
  %v407 = vsel %vm397, %v393, 1326507024
  %v408 = vsel %vm396, %v390, %v407
  %v409 = vsel %vm395, %v406, %v408
  %v410 = vshll.u32 %v370, 8
  %v411 = vand.u32 %v410, 65535
  %v412 = vshrl.u32 %v410, 16
  %v413 = vand.u32 %v409, 65535
  %v414 = vshrl.u32 %v409, 16
  %v415 = vmul.u32 %v411, %v413
  %v416 = vmul.u32 %v411, %v414
  %v417 = vmul.u32 %v412, %v413
  %v418 = vmul.u32 %v412, %v414
  %v419 = vshll.u32 %v416, 16
  %v420 = vshrl.u32 %v416, 16
  %v421 = vshll.u32 %v417, 16
  %v422 = vshrl.u32 %v417, 16
  %vm423 = vc.u32 %v415, %v419
  %v424 = vsel %vm423, 1, 0
  %v425 = vadd.s32 %v415, %v419
  %v426 = vadd.s32 %v418, %v424
  %vm427 = vc.u32 %v425, %v421
  %v428 = vsel %vm427, 1, 0
  %v429 = vadd.s32 %v425, %v421
  %v430 = vadd.s32 %v426, %v428
  %v431 = vadd.s32 %v430, %v420
  %v432 = vadd.s32 %v431, %v422
  %v433 = vand.u32 %v410, 65535
  %v434 = vshrl.u32 %v410, 16
  %v435 = vand.u32 %v405, 65535
  %v436 = vshrl.u32 %v405, 16
  %v437 = vmul.u32 %v433, %v435
  %v438 = vmul.u32 %v433, %v436
  %v439 = vmul.u32 %v434, %v435
  %v440 = vmul.u32 %v434, %v436
  %v441 = vshll.u32 %v438, 16
  %v442 = vshrl.u32 %v438, 16
  %v443 = vshll.u32 %v439, 16
  %v444 = vshrl.u32 %v439, 16
  %vm445 = vc.u32 %v437, %v441
  %v446 = vsel %vm445, 1, 0
  %v447 = vadd.s32 %v437, %v441
  %v448 = vadd.s32 %v440, %v446
  %vm449 = vc.u32 %v447, %v443
  %v450 = vsel %vm449, 1, 0
  %v451 = vadd.s32 %v447, %v443
  %v452 = vadd.s32 %v448, %v450
  %v453 = vadd.s32 %v452, %v442
  %v454 = vadd.s32 %v453, %v444
  %v455 = vmul.u32 %v410, %v401
  %v456 = vadd.s32 %v432, %v451
  %vm457 = vc.u32 %v432, %v451
  %v458 = vadd.s32 %v454, 1
  %v459 = vsel %vm457, %v458, %v454
  %v460 = vadd.s32 %v455, %v459
  %v461 = vadd.s32 %v460, 536870912
  %v462 = vshrl.u32 %v461, 30
  %v463 = vshll.u32 %v462, 30
  %v464 = vsub.s32 %v460, %v463
  %vm465 = vcmp.lt.s32.totalorder %v464, 0
  %v466 = vsub.s32 0, %v464
  %v467 = vsel %vm465, %v466, %v464
  %v468 = vclz %v467
  %v469 = vsub.s32 %v468, 2
  %vm470 = vcmp.gt.s32.totalorder 0, %v469
  %v471 = vsel %vm470, 0, %v469
  %v472 = vsub.s32 32, %v471
  %v473 = vshll.u32 %v464, %v471
  %v474 = vshrl.u32 %v456, %v472
  %v475 = vor.u32 %v473, %v474
  %v476 = vsub.s32 4294967266, %v471
  %v477 = vadd.s32 %v476, 127
  %v478 = vshll.u32 %v477, 23
  %v479 = vor.u32 4788187, %v478
  %v480 = vand.u32 2147483647, %v479
  %v482 = vcvt.s32.f32 %v475
  %v483 = vmul.f32 %v482, %v480
  %v484 = vxor.u32 %v483, 2147483648
  %v485 = vsel %vm364, %v484, %v483
  %v486 = vsub.s32 4, %v462
  %v487 = vsel %vm364, %v486, %v462
  %v488 = vsel %vm363, %v360, %v485
  %v489 = vsel %vm363, 0, %v487
  %v490 = vmul.f32 %v488, %v488
  %v491 = vmul.f32 %v490, -0.001358992
  %v492 = vadd.f32 %v491, 0.041655596
  %v493 = vmul.f32 %v490, %v492
  %v494 = vadd.f32 %v493, -0.4999988
  %v495 = vmul.f32 %v490, %v494
  %v496 = vadd.f32 1.0, %v495
  %v497 = vmul.f32 %v488, %v488
  %v498 = vmul.f32 %v497, -0.00019511016
  %v499 = vadd.f32 %v498, 0.008332121
  %v500 = vmul.f32 %v497, %v499
  %v501 = vadd.f32 %v500, -0.16666654
  %v502 = vmul.f32 %v497, %v501
  %v503 = vadd.f32 %v502, 1.0
  %v504 = vmul.f32 %v503, %v488
  %vm505 = vweird.f32 %v360
  %v506 = vadd.s32 %v489, 3
  %v507 = vand.u32 %v506, 3
  %vm508 = vcmp.lt.s32.totalorder %v507, 2
  %vm509 = vcmp.eq.s32.totalorder %v507, 0
  %v510 = vxor.u32 %v504, 2147483648
  %v511 = vsel %vm509, %v496, %v510
  %vm512 = vcmp.eq.s32.totalorder %v507, 2
  %v513 = vxor.u32 %v496, 2147483648
  %v514 = vsel %vm512, %v513, %v504
  %v515 = vsel %vm508, %v511, %v514
  %v516 = vsel %vm505, nan, %v515
  %v517 = vand.u32 2147483647, %v361
  %vm518 = vcmp.le.f32.partialorder %v517, 0.7853982
  %vm519 = vcmp.lt.s32.totalorder %v361, 0
  %v520 = vand.u32 %v361, 2139095040
  %v521 = vshrl.u32 %v520, 23
  %v522 = vsub.s32 %v521, 127
  %v523 = vand.u32 2147483647, %v361
  %v524 = vand.u32 %v523, 8388607
  %v525 = vor.u32 %v524, 8388608
  %v526 = vsub.s32 0, %v525
  %v527 = vadd.s32 %v522, 1
  %vm528 = vcmp.gt.s32.totalorder %v527, 0
  %v529 = vsel %vm528, %v527, 0
  %v530 = vshrl.u32 %v529, 5
  %v531 = vand.u32 %v529, 31
  %v532 = vsub.s32 32, %v531
  %v533 = vshrl.u32 683565275, %v532
  %v534 = vshll.u32 683565275, %v531
  %v535 = vshrl.u32 2475754826, %v532
  %v536 = vor.u32 %v534, %v535
  %v537 = vshll.u32 2475754826, %v531
  %v538 = vshrl.u32 2131351028, %v532
  %v539 = vor.u32 %v537, %v538
  %v540 = vshll.u32 2131351028, %v531
  %v541 = vshrl.u32 2102212464, %v532
  %v542 = vor.u32 %v540, %v541
  %v543 = vshll.u32 2102212464, %v531
  %v544 = vshrl.u32 920167782, %v532
  %v545 = vor.u32 %v543, %v544
  %v546 = vshll.u32 920167782, %v531
  %v547 = vshrl.u32 1326507024, %v532
  %v548 = vor.u32 %v546, %v547
  %vm549 = vcmp.lt.s32.totalorder %v530, 1
  %vm550 = vcmp.lt.s32.totalorder %v530, 2
  %vm551 = vcmp.lt.s32.totalorder %v530, 3
  %vm552 = vcmp.lt.s32.totalorder %v530, 4
  %v553 = vsel %vm549, %v533, %v536
  %v554 = vsel %vm552, %v542, 2102212464
  %v555 = vsel %vm551, %v539, %v554
  %v556 = vsel %vm550, %v553, %v555
  %v557 = vsel %vm549, %v536, %v539
  %v558 = vsel %vm552, %v545, 920167782
  %v559 = vsel %vm551, %v542, %v558
  %v560 = vsel %vm550, %v557, %v559
  %v561 = vsel %vm549, %v539, %v542
  %v562 = vsel %vm552, %v548, 1326507024
  %v563 = vsel %vm551, %v545, %v562
  %v564 = vsel %vm550, %v561, %v563
  %v565 = vshll.u32 %v525, 8
  %v566 = vand.u32 %v565, 65535
  %v567 = vshrl.u32 %v565, 16
  %v568 = vand.u32 %v564, 65535
  %v569 = vshrl.u32 %v564, 16
  %v570 = vmul.u32 %v566, %v568
  %v571 = vmul.u32 %v566, %v569
  %v572 = vmul.u32 %v567, %v568
  %v573 = vmul.u32 %v567, %v569
  %v574 = vshll.u32 %v571, 16
  %v575 = vshrl.u32 %v571, 16
  %v576 = vshll.u32 %v572, 16
  %v577 = vshrl.u32 %v572, 16
  %vm578 = vc.u32 %v570, %v574
  %v579 = vsel %vm578, 1, 0
  %v580 = vadd.s32 %v570, %v574
  %v581 = vadd.s32 %v573, %v579
  %vm582 = vc.u32 %v580, %v576
  %v583 = vsel %vm582, 1, 0
  %v584 = vadd.s32 %v580, %v576
  %v585 = vadd.s32 %v581, %v583
  %v586 = vadd.s32 %v585, %v575
  %v587 = vadd.s32 %v586, %v577
  %v588 = vand.u32 %v565, 65535
  %v589 = vshrl.u32 %v565, 16
  %v590 = vand.u32 %v560, 65535
  %v591 = vshrl.u32 %v560, 16
  %v592 = vmul.u32 %v588, %v590
  %v593 = vmul.u32 %v588, %v591
  %v594 = vmul.u32 %v589, %v590
  %v595 = vmul.u32 %v589, %v591
  %v596 = vshll.u32 %v593, 16
  %v597 = vshrl.u32 %v593, 16
  %v598 = vshll.u32 %v594, 16
  %v599 = vshrl.u32 %v594, 16
  %vm600 = vc.u32 %v592, %v596
  %v601 = vsel %vm600, 1, 0
  %v602 = vadd.s32 %v592, %v596
  %v603 = vadd.s32 %v595, %v601
  %vm604 = vc.u32 %v602, %v598
  %v605 = vsel %vm604, 1, 0
  %v606 = vadd.s32 %v602, %v598
  %v607 = vadd.s32 %v603, %v605
  %v608 = vadd.s32 %v607, %v597
  %v609 = vadd.s32 %v608, %v599
  %v610 = vmul.u32 %v565, %v556
  %v611 = vadd.s32 %v587, %v606
  %vm612 = vc.u32 %v587, %v606
  %v613 = vadd.s32 %v609, 1
  %v614 = vsel %vm612, %v613, %v609
  %v615 = vadd.s32 %v610, %v614
  %v616 = vadd.s32 %v615, 536870912
  %v617 = vshrl.u32 %v616, 30
  %v618 = vshll.u32 %v617, 30
  %v619 = vsub.s32 %v615, %v618
  %vm620 = vcmp.lt.s32.totalorder %v619, 0
  %v621 = vsub.s32 0, %v619
  %v622 = vsel %vm620, %v621, %v619
  %v623 = vclz %v622
  %v624 = vsub.s32 %v623, 2
  %vm625 = vcmp.gt.s32.totalorder 0, %v624
  %v626 = vsel %vm625, 0, %v624
  %v627 = vsub.s32 32, %v626
  %v628 = vshll.u32 %v619, %v626
  %v629 = vshrl.u32 %v611, %v627
  %v630 = vor.u32 %v628, %v629
  %v631 = vsub.s32 4294967266, %v626
  %v632 = vadd.s32 %v631, 127
  %v633 = vshll.u32 %v632, 23
  %v634 = vor.u32 4788187, %v633
  %v635 = vand.u32 2147483647, %v634
  %v637 = vcvt.s32.f32 %v630
  %v638 = vmul.f32 %v637, %v635
  %v639 = vxor.u32 %v638, 2147483648
  %v640 = vsel %vm519, %v639, %v638
  %v641 = vsub.s32 4, %v617
  %v642 = vsel %vm519, %v641, %v617
  %v643 = vsel %vm518, %v361, %v640
  %v644 = vsel %vm518, 0, %v642
  %v645 = vmul.f32 %v643, %v643
  %v646 = vmul.f32 %v645, -0.001358992
  %v647 = vadd.f32 %v646, 0.041655596
  %v648 = vmul.f32 %v645, %v647
  %v649 = vadd.f32 %v648, -0.4999988
  %v650 = vmul.f32 %v645, %v649
  %v651 = vadd.f32 1.0, %v650
  %v652 = vmul.f32 %v643, %v643
  %v653 = vmul.f32 %v652, -0.00019511016
  %v654 = vadd.f32 %v653, 0.008332121
  %v655 = vmul.f32 %v652, %v654
  %v656 = vadd.f32 %v655, -0.16666654
  %v657 = vmul.f32 %v652, %v656
  %v658 = vadd.f32 %v657, 1.0
  %v659 = vmul.f32 %v658, %v643
  %vm660 = vweird.f32 %v361
  %v661 = vadd.s32 %v644, 3
  %v662 = vand.u32 %v661, 3
  %vm663 = vcmp.lt.s32.totalorder %v662, 2
  %vm664 = vcmp.eq.s32.totalorder %v662, 0
  %v665 = vxor.u32 %v659, 2147483648
  %v666 = vsel %vm664, %v651, %v665
  %vm667 = vcmp.eq.s32.totalorder %v662, 2
  %v668 = vxor.u32 %v651, 2147483648
  %v669 = vsel %vm667, %v668, %v659
  %v670 = vsel %vm663, %v666, %v669
  %v671 = vsel %vm660, nan, %v670
  %672 = vst.msk [vmem:[%s4 + $0xf] sm:$0xff] %vm344, %v516
  %673 = vst.msk [vmem:[%s4 + $0x17] sm:$0xf] %vm346, %v671
  // Predicated region
  $region18: #{tpu_custom_call.1} parent=0 // pred_check
    _
  $region19: #{tpu_custom_call.1} parent=0 // pred_check_branch
    %675 = sbr.rel (0) target = $region21
  $region20: #{tpu_custom_call.1} parent=0 // pred_region
    _
  $region21: #{tpu_custom_call.1} parent=0 // pred_fallthru
    _
  // Predicated region
  $region22: #{tpu_custom_call.1} parent=0 // pred_check
    _
  $region23: #{tpu_custom_call.1} parent=0 // pred_check_branch
    %677 = sbr.rel (0) target = $region25
  $region24: #{tpu_custom_call.1} parent=0 // pred_region
    _
  $region25: #{tpu_custom_call.1} parent=0 // pred_fallthru
    _

</llo_original>
